<compile_context>
chip_gen: v5e
topology: v5e:2x2
jax: 0.10.0
libtpu: 0.0.40
codegen_flags: <defaults>
</compile_context>

<pallas_src>
import jax
import jax.numpy as jnp
from jax.experimental import pallas as pl
from jax.experimental.pallas import tpu as pltpu

LANE = 128          # lane width: last block dim multiple (for padded feature dims)
SUBLANE = 8         # sublane: second-to-last block dim multiple
MAX_BATCH_TILE = 512


def _round_up(x, m):
    return ((x + m - 1) // m) * m


def _cdiv(a, b):
    return (a + b - 1) // b


# ---------------------------------------------------------------------------
# Pallas kernel: full 3-layer MLP forward for one batch tile.
# Weights arrive pre-padded (lane-dense) and pre-cast to bf16; obs is f32 with
# its true feature width. All matmuls: bf16 x bf16 -> f32 accumulation on the
# MXU; bias-add / tanh in f32 on the VPU/EUP.
# ---------------------------------------------------------------------------
def mlp_policy_kernel(x_ref, w1_ref, b1_ref, w2_ref, b2_ref, w3_ref, b3_ref,
                      mean_ref):
    x = x_ref[...].astype(jnp.bfloat16)                              # [TB, ob_dim]

    # hidden layer 1: Linear + tanh
    h = jnp.dot(x, w1_ref[...], preferred_element_type=jnp.float32) + b1_ref[...]
    h = jnp.tanh(h)                                                  # [TB, size_p] f32

    # hidden layer 2: Linear + tanh
    h = jnp.dot(h.astype(jnp.bfloat16), w2_ref[...],
                preferred_element_type=jnp.float32) + b2_ref[...]
    h = jnp.tanh(h)                                                  # [TB, size_p] f32

    # output layer: Linear (identity) -> action mean
    mean = jnp.dot(h.astype(jnp.bfloat16), w3_ref[...],
                   preferred_element_type=jnp.float32) + b3_ref[...]
    mean_ref[...] = mean                                             # [TB, ac_p] f32


# ---------------------------------------------------------------------------
# One-time parameter preparation (run once per parameter update, NOT per
# forward call): pad feature dims to lane-dense multiples of 128 and cast the
# matmul weights to bf16. Biases stay f32 (added in f32 inside the kernel).
# ---------------------------------------------------------------------------
def prepare_params(params):
    ob_dim, size = params["w1"].shape
    ac_dim = params["w3"].shape[1]
    size_p = _round_up(size, LANE)
    ac_p = _round_up(ac_dim, LANE)

    def pad2(a, rows, cols, dtype):
        a = jnp.asarray(a, jnp.float32)
        a = jnp.pad(a, ((0, rows - a.shape[0]), (0, cols - a.shape[1])))
        return a.astype(dtype)

    return dict(
        # w1 keeps the true ob_dim on its contraction dim (obs is not lane-padded).
        w1=pad2(params["w1"], ob_dim, size_p, jnp.bfloat16),
        b1=pad2(params["b1"].reshape(1, -1), 1, size_p, jnp.float32),
        w2=pad2(params["w2"], size_p, size_p, jnp.bfloat16),
        b2=pad2(params["b2"].reshape(1, -1), 1, size_p, jnp.float32),
        w3=pad2(params["w3"], size_p, ac_p, jnp.bfloat16),
        b3=pad2(params["b3"].reshape(1, -1), 1, ac_p, jnp.float32),
        logstd=jnp.asarray(params["logstd"], jnp.float32),
    )


# ---------------------------------------------------------------------------
# Hot-path forward. Returns (mean_padded [B_p, ac_p] f32, std [ac_dim] f32).
# The action mean is mean_padded[:B, :ac_dim]; the padded buffer is returned
# unsliced so downstream consumers (Normal.log_prob / sampling in update())
# can be fused in the same jit without an extra HBM slice pass.
# ---------------------------------------------------------------------------
@jax.jit
def mlp_policy_forward(obs, prepared):
    obs = obs.astype(jnp.float32)
    B, ob_dim = obs.shape
    size_p = prepared["w1"].shape[1]
    ac_p = prepared["w3"].shape[1]

    # Balanced tiling with >=2 grid steps (v7x megacore) and minimal tail padding.
    nsteps = max(2, _cdiv(B, MAX_BATCH_TILE))
    batch_tile = _round_up(_cdiv(B, nsteps), SUBLANE)
    B_p = nsteps * batch_tile

    obs_p = jnp.pad(obs, ((0, B_p - B), (0, 0)))   # cheap row-only pad

    # Grid-invariant blocks for weights / biases.
    const = lambda shape: pl.BlockSpec(shape, lambda i: (0, 0))
    # TODO(synk): pipeline_mode=pl.Buffered(1) on these constant specs once
    #             `size` grows enough for weight VMEM residency to matter.

    mean_p = pl.pallas_call(
        mlp_policy_kernel,
        out_shape=jax.ShapeDtypeStruct((B_p, ac_p), jnp.float32),
        grid_spec=pl.GridSpec(
            grid=(nsteps,),
            in_specs=[
                pl.BlockSpec((batch_tile, ob_dim), lambda i: (i, 0)),  # obs tile
                const((ob_dim, size_p)),                               # w1 (bf16)
                const((1, size_p)),                                    # b1
                const((size_p, size_p)),                               # w2 (bf16)
                const((1, size_p)),                                    # b2
                const((size_p, ac_p)),                                 # w3 (bf16)
                const((1, ac_p)),                                      # b3
            ],
            out_specs=pl.BlockSpec((batch_tile, ac_p), lambda i: (i, 0)),
        ),
        compiler_params=pltpu.CompilerParams(
            # Disjoint output tiles per grid step -> batch axis is parallel
            # (shards across the two TensorCores on v7x; harmless elsewhere).
            dimension_semantics=("parallel",),
        ),
    )(obs_p, prepared["w1"], prepared["b1"], prepared["w2"], prepared["b2"],
      prepared["w3"], prepared["b3"])

    # std = exp(logstd): ac_dim scalars — trivial XLA work, kept off the kernel.
    std = jnp.exp(prepared["logstd"])
    return mean_p, std


# ---------------------------------------------------------------------------
# Deterministic parameter init (mimics PyTorch nn.Linear default:
# U(-1/sqrt(fan_in), 1/sqrt(fan_in)); logstd = zeros like the module).
# ---------------------------------------------------------------------------
def init_params(key, ob_dim, size, ac_dim):
    def linear(key, fan_in, fan_out):
        kw, kb = jax.random.split(key)
        bound = 1.0 / jnp.sqrt(fan_in)
        w = jax.random.uniform(kw, (fan_in, fan_out), jnp.float32, -bound, bound)
        b = jax.random.uniform(kb, (fan_out,), jnp.float32, -bound, bound)
        return w, b

    k1, k2, k3 = jax.random.split(key, 3)
    w1, b1 = linear(k1, ob_dim, size)
    w2, b2 = linear(k2, size, size)
    w3, b3 = linear(k3, size, ac_dim)
    return dict(w1=w1, b1=b1, w2=w2, b2=b2, w3=w3, b3=b3,
                logstd=jnp.zeros((ac_dim,), jnp.float32))


def reference_forward_f32(obs, p):
    h = jnp.tanh(obs @ p["w1"] + p["b1"])
    h = jnp.tanh(h @ p["w2"] + p["b2"])
    mean = h @ p["w3"] + p["b3"]
    return mean, jnp.exp(p["logstd"])


def reference_forward_bf16(obs, p):
    """Precision-matched reference: bf16 MXU inputs, f32 accumulation."""
    bf = jnp.bfloat16
    dot = lambda x, w: jnp.dot(x.astype(bf), w.astype(bf),
                               preferred_element_type=jnp.float32)
    h = jnp.tanh(dot(obs, p["w1"]) + p["b1"])
    h = jnp.tanh(dot(h, p["w2"]) + p["b2"])
    mean = dot(h, p["w3"]) + p["b3"]
    return mean, jnp.exp(p["logstd"])


if __name__ == "__main__":
    # Shapes consistent with the module: n_layers=2, hidden size=64.
    ob_dim, size, ac_dim = 11, 64, 6

    key = jax.random.PRNGKey(0)
    k_obs, k_params = jax.random.split(key)
    params = init_params(k_params, ob_dim, size, ac_dim)
    prepared = prepare_params(params)   # one-time, off the per-call hot path

    # Two batch sizes: B=37 exercises the forced 2-step (2x24) path; B=600 the
    # balanced 2x304 tiling. Neither is divisible by 8.
    for B in (37, 600):
        obs = jax.random.normal(jax.random.fold_in(k_obs, B), (B, ob_dim),
                                jnp.float32)
        mean_p, std = jax.block_until_ready(mlp_policy_forward(obs, prepared))
        # Caller-side consumption of the padded mean (outside the hot-path jit).
        mean = mean_p[:B, :ac_dim]

        ref_mean_bf16, ref_std = reference_forward_bf16(obs, params)
        ref_mean_f32, _ = reference_forward_f32(obs, params)
        assert mean.shape == (B, ac_dim) and std.shape == (ac_dim,)
        assert jnp.allclose(mean, ref_mean_bf16, atol=5e-3, rtol=5e-3), \
            "mean mismatch vs bf16-matched reference"
        assert jnp.allclose(mean, ref_mean_f32, atol=3e-2, rtol=3e-2), \
            "mean mismatch vs f32 reference"
        assert jnp.allclose(std, ref_std, atol=1e-6, rtol=1e-6), "std mismatch"

    # TODO(synk): Normal.sample / log_prob and the Adam update (get_action /
    # update) are host/XLA-side glue; fuse log_prob with the padded mean in one
    # jit for the update path rather than slicing mean first.
    print("KERNEL_OK")
</pallas_src>

<mosaic_0001>
module attributes {stable_mosaic.version = 11 : i64} {
  func.func @mlp_policy_kernel(%arg0: i32, %arg1: memref<24x11xf32, #tpu.memory_space<vmem>>, %arg2: memref<11x128xbf16, #tpu.memory_space<vmem>>, %arg3: memref<1x128xf32, #tpu.memory_space<vmem>>, %arg4: memref<128x128xbf16, #tpu.memory_space<vmem>>, %arg5: memref<1x128xf32, #tpu.memory_space<vmem>>, %arg6: memref<128x128xbf16, #tpu.memory_space<vmem>>, %arg7: memref<1x128xf32, #tpu.memory_space<vmem>>, %arg8: memref<24x128xf32, #tpu.memory_space<vmem>>) attributes {dimension_semantics = [#tpu.dimension_semantics<parallel>], iteration_bounds = array<i64: 2>, scalar_prefetch = 0 : i64, scratch_operands = 0 : i64, tpu.core_type = #tpu.core_type<tc>, window_params = [{transform_indices = @transform_0, window_bounds = array<i64: 24, 11>}, {pipeline_mode = #tpu.pipeline_mode<synchronous>, transform_indices = @transform_1, window_bounds = array<i64: 11, 128>}, {pipeline_mode = #tpu.pipeline_mode<synchronous>, transform_indices = @transform_2, window_bounds = array<i64: 1, 128>}, {pipeline_mode = #tpu.pipeline_mode<synchronous>, transform_indices = @transform_3, window_bounds = array<i64: 128, 128>}, {pipeline_mode = #tpu.pipeline_mode<synchronous>, transform_indices = @transform_4, window_bounds = array<i64: 1, 128>}, {pipeline_mode = #tpu.pipeline_mode<synchronous>, transform_indices = @transform_5, window_bounds = array<i64: 128, 128>}, {pipeline_mode = #tpu.pipeline_mode<synchronous>, transform_indices = @transform_6, window_bounds = array<i64: 1, 128>}, {transform_indices = @transform_7, window_bounds = array<i64: 24, 128>}]} {
    %c0 = arith.constant 0 : index
    %c0_0 = arith.constant 0 : index
    %0 = vector.load %arg1[%c0, %c0_0] : memref<24x11xf32, #tpu.memory_space<vmem>>, vector<24x11xf32>
    %1 = arith.truncf %0 : vector<24x11xf32> to vector<24x11xbf16>
    %c0_1 = arith.constant 0 : index
    %c0_2 = arith.constant 0 : index
    %2 = vector.load %arg2[%c0_1, %c0_2] : memref<11x128xbf16, #tpu.memory_space<vmem>>, vector<11x128xbf16>
    %cst = arith.constant dense<0.000000e+00> : vector<24x128xf32>
    %3 = tpu.matmul %1, %2, %cst {dimension_numbers = #tpu.dot_dimension_numbers<[1], [0], [0], [1], [0, 0, 1, 1], [], []>} : vector<24x11xbf16>, vector<11x128xbf16>, vector<24x128xf32> -> vector<24x128xf32>
    %c0_3 = arith.constant 0 : index
    %c0_4 = arith.constant 0 : index
    %4 = vector.load %arg3[%c0_3, %c0_4] : memref<1x128xf32, #tpu.memory_space<vmem>>, vector<1x128xf32>
    %5 = vector.broadcast %4 : vector<1x128xf32> to vector<24x128xf32>
    %6 = arith.addf %3, %5 : vector<24x128xf32>
    %7 = math.tanh %6 : vector<24x128xf32>
    %8 = arith.truncf %7 : vector<24x128xf32> to vector<24x128xbf16>
    %c0_5 = arith.constant 0 : index
    %c0_6 = arith.constant 0 : index
    %9 = vector.load %arg4[%c0_5, %c0_6] : memref<128x128xbf16, #tpu.memory_space<vmem>>, vector<128x128xbf16>
    %cst_7 = arith.constant dense<0.000000e+00> : vector<24x128xf32>
    %10 = tpu.matmul %8, %9, %cst_7 {dimension_numbers = #tpu.dot_dimension_numbers<[1], [0], [0], [1], [0, 0, 1, 1], [], []>} : vector<24x128xbf16>, vector<128x128xbf16>, vector<24x128xf32> -> vector<24x128xf32>
    %c0_8 = arith.constant 0 : index
    %c0_9 = arith.constant 0 : index
    %11 = vector.load %arg5[%c0_8, %c0_9] : memref<1x128xf32, #tpu.memory_space<vmem>>, vector<1x128xf32>
    %12 = vector.broadcast %11 : vector<1x128xf32> to vector<24x128xf32>
    %13 = arith.addf %10, %12 : vector<24x128xf32>
    %14 = math.tanh %13 : vector<24x128xf32>
    %15 = arith.truncf %14 : vector<24x128xf32> to vector<24x128xbf16>
    %c0_10 = arith.constant 0 : index
    %c0_11 = arith.constant 0 : index
    %16 = vector.load %arg6[%c0_10, %c0_11] : memref<128x128xbf16, #tpu.memory_space<vmem>>, vector<128x128xbf16>
    %cst_12 = arith.constant dense<0.000000e+00> : vector<24x128xf32>
    %17 = tpu.matmul %15, %16, %cst_12 {dimension_numbers = #tpu.dot_dimension_numbers<[1], [0], [0], [1], [0, 0, 1, 1], [], []>} : vector<24x128xbf16>, vector<128x128xbf16>, vector<24x128xf32> -> vector<24x128xf32>
    %c0_13 = arith.constant 0 : index
    %c0_14 = arith.constant 0 : index
    %18 = vector.load %arg7[%c0_13, %c0_14] : memref<1x128xf32, #tpu.memory_space<vmem>>, vector<1x128xf32>
    %19 = vector.broadcast %18 : vector<1x128xf32> to vector<24x128xf32>
    %20 = arith.addf %17, %19 : vector<24x128xf32>
    %c0_15 = arith.constant 0 : index
    %c0_16 = arith.constant 0 : index
    %21 = vector.load %arg8[%c0_15, %c0_16] : memref<24x128xf32, #tpu.memory_space<vmem>>, vector<24x128xf32>
    tpu.vector_store %arg8[%c0_15, %c0_16], %20 {strides = array<i32>} : memref<24x128xf32, #tpu.memory_space<vmem>>, vector<24x128xf32>,
    return
  }
  func.func @transform_0(%arg0: i32) -> (i32, i32) {
    %c0_i32 = arith.constant 0 : i32
    %c0_i32_0 = arith.constant 0 : i32
    return %arg0, %c0_i32 : i32, i32
  }
  func.func @transform_1(%arg0: i32) -> (i32, i32) {
    %c0_i32 = arith.constant 0 : i32
    %c0_i32_0 = arith.constant 0 : i32
    %c0_i32_1 = arith.constant 0 : i32
    return %c0_i32, %c0_i32_0 : i32, i32
  }
  func.func @transform_2(%arg0: i32) -> (i32, i32) {
    %c0_i32 = arith.constant 0 : i32
    %c0_i32_0 = arith.constant 0 : i32
    %c0_i32_1 = arith.constant 0 : i32
    return %c0_i32, %c0_i32_0 : i32, i32
  }
  func.func @transform_3(%arg0: i32) -> (i32, i32) {
    %c0_i32 = arith.constant 0 : i32
    %c0_i32_0 = arith.constant 0 : i32
    %c0_i32_1 = arith.constant 0 : i32
    return %c0_i32, %c0_i32_0 : i32, i32
  }
  func.func @transform_4(%arg0: i32) -> (i32, i32) {
    %c0_i32 = arith.constant 0 : i32
    %c0_i32_0 = arith.constant 0 : i32
    %c0_i32_1 = arith.constant 0 : i32
    return %c0_i32, %c0_i32_0 : i32, i32
  }
  func.func @transform_5(%arg0: i32) -> (i32, i32) {
    %c0_i32 = arith.constant 0 : i32
    %c0_i32_0 = arith.constant 0 : i32
    %c0_i32_1 = arith.constant 0 : i32
    return %c0_i32, %c0_i32_0 : i32, i32
  }
  func.func @transform_6(%arg0: i32) -> (i32, i32) {
    %c0_i32 = arith.constant 0 : i32
    %c0_i32_0 = arith.constant 0 : i32
    %c0_i32_1 = arith.constant 0 : i32
    return %c0_i32, %c0_i32_0 : i32, i32
  }
  func.func @transform_7(%arg0: i32) -> (i32, i32) {
    %c0_i32 = arith.constant 0 : i32
    %c0_i32_0 = arith.constant 0 : i32
    return %arg0, %c0_i32 : i32, i32
  }
}

</mosaic_0001>

<llo_original>
// kernel: mlp_policy_forward.1
$region0: #{mlp_policy_forward.1}
  #allocation0 [shape = 'u32[]', space=smem, size = 0x4, offset = 0x4, fixed_abs, tag = 'smem constant byte address 0x4 - core index']
  #allocation1 [shape = 'u32[72,128]{1,0:T(1,128)}', space=vmem, size = 0x9000, scoped, tag = 'internal scratch']
  %s0 = inlined_call_operand.vmem [shape: f32[48,11], index: 0, kind: input, shape index: {}]
  %s1 = inlined_call_operand.vmem [shape: bf16[11,128], index: 1, kind: input, shape index: {}]
  %s2 = inlined_call_operand.vmem [shape: f32[1,128], index: 2, kind: input, shape index: {}]
  %s3 = inlined_call_operand.vmem [shape: bf16[128,128], index: 3, kind: input, shape index: {}]
  %s4 = inlined_call_operand.vmem [shape: f32[1,128], index: 4, kind: input, shape index: {}]
  %s5 = inlined_call_operand.vmem [shape: bf16[128,128], index: 5, kind: input, shape index: {}]
  %s6 = inlined_call_operand.vmem [shape: f32[1,128], index: 6, kind: input, shape index: {}]
  %s7 = inlined_call_operand.hbm [shape: f32[48,128], index: 7, kind: output, shape index: {}]
  %s8 = sld [smem:[#allocation0]]
  $region61: #{mlp_policy_forward.1} parent=0
    _
  %s10 = ssub.s32 1, %s8
  %s11 = scalar_select 0, %s10, %s8
  $region1: #{mlp_policy_forward.1} parent=0
    #allocation2 [shape = 'u8[24576]{0}', space=vmem, size = 0x6000, scoped, tag = 'output window, operand 0']
    #allocation3 [shape = 's32[2]{0}', space=sflag, size = 0x8, scoped, tag = 'scoped memory for mlp_policy_forward.1']
    %12 = vsyncpa [#allocation3], 0
    %s13 = scalar_lea.sflag [#allocation3], 1
    %14 = vsyncpa %s13, 0
    loop: start=0, step=1, limit=4
    $region2: #{mlp_policy_forward.1} parent=1 // loop_pre_header
      _
    $region3: #{mlp_policy_forward.1} parent=1 // loop_header
      %s16 = sphi 0, %s20
      %p17 = scmp.ge.s32.totalorder %s16, 4
      %s26 = sphi 0, %s28
      %s29 = sphi 0, %s26
      %s30 = sphi 0, %s29
      %s46 = sphi 0, %s30
      %s50 = sphi 0, %s50
      %s52 = sphi 0, %s50
      %s53 = sphi 0, %s52
      %s67 = sphi 0, %s53
      %s71 = sphi 0, %s71
      %s73 = sphi 0, %s71
      %s74 = sphi 0, %s73
      %s88 = sphi 0, %s74
      %s92 = sphi 0, %s92
      %s94 = sphi 0, %s92
      %s95 = sphi 0, %s94
      %s109 = sphi 0, %s95
      %s113 = sphi 0, %s113
      %s115 = sphi 0, %s113
      %s116 = sphi 0, %s115
      %s130 = sphi 0, %s116
      %s134 = sphi 0, %s134
      %s136 = sphi 0, %s134
      %s137 = sphi 0, %s136
      %s151 = sphi 0, %s137
      %s155 = sphi 0, %s155
      %s157 = sphi 0, %s155
      %s158 = sphi 0, %s157
      %s172 = sphi 0, %s158
      %s178 = sphi 0, %s180
      %s181 = sphi 0, %s178
      %s182 = sphi 0, %s181
      %s198 = sphi 0, %s182
    $region4: #{mlp_policy_forward.1} parent=1 // loop_header_branch
      %19 = sbr.rel (%p17) target = $region8
    $region5: #{mlp_policy_forward.1} parent=1 // loop_body
      %s21 = ssub.s32 %s16, 1
      %s22 = ssub.s32 %s16, 2
      %s23 = sadd.s32 %s16, 1
      %s24 = ssub.s32 %s16, %s23
      %p25 = scmp.eq.s32.totalorder %s24, 0
      %s27 = sadd.s32 %s26, 1
      %s28 = scalar_select %p25, %s26, %s27
      %p31 = pneg %p25
      %p32 = scmp.eq.s32.totalorder %s16, 1
      %p33 = por %p31, %p32
      %p34 = scmp.ne.s32.totalorder %s26, %s29
      %p35 = scmp.eq.s32.totalorder %s16, 0
      %p36 = por %p34, %p35
      %p37 = scmp.ne.s32.totalorder %s26, %s29
      %p38 = scmp.eq.s32.totalorder %s21, 1
      %p39 = por %p37, %p38
      %p40 = scmp.ne.s32.totalorder %s29, %s30
      %p41 = scmp.eq.s32.totalorder %s21, 0
      %p42 = por %p40, %p41
      %p43 = scmp.ne.s32.totalorder %s29, %s30
      %p44 = scmp.eq.s32.totalorder %s22, 1
      %p45 = por %p43, %p44
      %p47 = scmp.ne.s32.totalorder %s30, %s46
      %p48 = scmp.eq.s32.totalorder %s22, 0
      %p49 = por %p47, %p48
      %s51 = sadd.s32 %s50, 1
      %p54 = scmp.eq.s32.totalorder %s16, 1
      %p55 = scmp.ne.s32.totalorder %s50, %s52
      %p56 = scmp.eq.s32.totalorder %s16, 0
      %p57 = por %p55, %p56
      %p58 = scmp.ne.s32.totalorder %s50, %s52
      %p59 = scmp.eq.s32.totalorder %s21, 1
      %p60 = por %p58, %p59
      %p61 = scmp.ne.s32.totalorder %s52, %s53
      %p62 = scmp.eq.s32.totalorder %s21, 0
      %p63 = por %p61, %p62
      %p64 = scmp.ne.s32.totalorder %s52, %s53
      %p65 = scmp.eq.s32.totalorder %s22, 1
      %p66 = por %p64, %p65
      %p68 = scmp.ne.s32.totalorder %s53, %s67
      %p69 = scmp.eq.s32.totalorder %s22, 0
      %p70 = por %p68, %p69
      %s72 = sadd.s32 %s71, 1
      %p75 = scmp.eq.s32.totalorder %s16, 1
      %p76 = scmp.ne.s32.totalorder %s71, %s73
      %p77 = scmp.eq.s32.totalorder %s16, 0
      %p78 = por %p76, %p77
      %p79 = scmp.ne.s32.totalorder %s71, %s73
      %p80 = scmp.eq.s32.totalorder %s21, 1
      %p81 = por %p79, %p80
      %p82 = scmp.ne.s32.totalorder %s73, %s74
      %p83 = scmp.eq.s32.totalorder %s21, 0
      %p84 = por %p82, %p83
      %p85 = scmp.ne.s32.totalorder %s73, %s74
      %p86 = scmp.eq.s32.totalorder %s22, 1
      %p87 = por %p85, %p86
      %p89 = scmp.ne.s32.totalorder %s74, %s88
      %p90 = scmp.eq.s32.totalorder %s22, 0
      %p91 = por %p89, %p90
      %s93 = sadd.s32 %s92, 1
      %p96 = scmp.eq.s32.totalorder %s16, 1
      %p97 = scmp.ne.s32.totalorder %s92, %s94
      %p98 = scmp.eq.s32.totalorder %s16, 0
      %p99 = por %p97, %p98
      %p100 = scmp.ne.s32.totalorder %s92, %s94
      %p101 = scmp.eq.s32.totalorder %s21, 1
      %p102 = por %p100, %p101
      %p103 = scmp.ne.s32.totalorder %s94, %s95
      %p104 = scmp.eq.s32.totalorder %s21, 0
      %p105 = por %p103, %p104
      %p106 = scmp.ne.s32.totalorder %s94, %s95
      %p107 = scmp.eq.s32.totalorder %s22, 1
      %p108 = por %p106, %p107
      %p110 = scmp.ne.s32.totalorder %s95, %s109
      %p111 = scmp.eq.s32.totalorder %s22, 0
      %p112 = por %p110, %p111
      %s114 = sadd.s32 %s113, 1
      %p117 = scmp.eq.s32.totalorder %s16, 1
      %p118 = scmp.ne.s32.totalorder %s113, %s115
      %p119 = scmp.eq.s32.totalorder %s16, 0
      %p120 = por %p118, %p119
      %p121 = scmp.ne.s32.totalorder %s113, %s115
      %p122 = scmp.eq.s32.totalorder %s21, 1
      %p123 = por %p121, %p122
      %p124 = scmp.ne.s32.totalorder %s115, %s116
      %p125 = scmp.eq.s32.totalorder %s21, 0
      %p126 = por %p124, %p125
      %p127 = scmp.ne.s32.totalorder %s115, %s116
      %p128 = scmp.eq.s32.totalorder %s22, 1
      %p129 = por %p127, %p128
      %p131 = scmp.ne.s32.totalorder %s116, %s130
      %p132 = scmp.eq.s32.totalorder %s22, 0
      %p133 = por %p131, %p132
      %s135 = sadd.s32 %s134, 1
      %p138 = scmp.eq.s32.totalorder %s16, 1
      %p139 = scmp.ne.s32.totalorder %s134, %s136
      %p140 = scmp.eq.s32.totalorder %s16, 0
      %p141 = por %p139, %p140
      %p142 = scmp.ne.s32.totalorder %s134, %s136
      %p143 = scmp.eq.s32.totalorder %s21, 1
      %p144 = por %p142, %p143
      %p145 = scmp.ne.s32.totalorder %s136, %s137
      %p146 = scmp.eq.s32.totalorder %s21, 0
      %p147 = por %p145, %p146
      %p148 = scmp.ne.s32.totalorder %s136, %s137
      %p149 = scmp.eq.s32.totalorder %s22, 1
      %p150 = por %p148, %p149
      %p152 = scmp.ne.s32.totalorder %s137, %s151
      %p153 = scmp.eq.s32.totalorder %s22, 0
      %p154 = por %p152, %p153
      %s156 = sadd.s32 %s155, 1
      %p159 = scmp.eq.s32.totalorder %s16, 1
      %p160 = scmp.ne.s32.totalorder %s155, %s157
      %p161 = scmp.eq.s32.totalorder %s16, 0
      %p162 = por %p160, %p161
      %p163 = scmp.ne.s32.totalorder %s155, %s157
      %p164 = scmp.eq.s32.totalorder %s21, 1
      %p165 = por %p163, %p164
      %p166 = scmp.ne.s32.totalorder %s157, %s158
      %p167 = scmp.eq.s32.totalorder %s21, 0
      %p168 = por %p166, %p167
      %p169 = scmp.ne.s32.totalorder %s157, %s158
      %p170 = scmp.eq.s32.totalorder %s22, 1
      %p171 = por %p169, %p170
      %p173 = scmp.ne.s32.totalorder %s158, %s172
      %p174 = scmp.eq.s32.totalorder %s22, 0
      %p175 = por %p173, %p174
      %s176 = ssub.s32 %s16, %s23
      %p177 = scmp.eq.s32.totalorder %s176, 0
      %s179 = sadd.s32 %s178, 1
      %s180 = scalar_select %p177, %s178, %s179
      %p183 = pneg %p177
      %p184 = scmp.eq.s32.totalorder %s16, 1
      %p185 = por %p183, %p184
      %p186 = scmp.ne.s32.totalorder %s178, %s181
      %p187 = scmp.eq.s32.totalorder %s16, 0
      %p188 = por %p186, %p187
      %p189 = scmp.ne.s32.totalorder %s178, %s181
      %p190 = scmp.eq.s32.totalorder %s21, 1
      %p191 = por %p189, %p190
      %p192 = scmp.ne.s32.totalorder %s181, %s182
      %p193 = scmp.eq.s32.totalorder %s21, 0
      %p194 = por %p192, %p193
      %p195 = scmp.ne.s32.totalorder %s181, %s182
      %p196 = scmp.eq.s32.totalorder %s22, 1
      %p197 = por %p195, %p196
      %p199 = scmp.ne.s32.totalorder %s182, %s198
      %p200 = scmp.eq.s32.totalorder %s22, 0
      %p201 = por %p199, %p200
      %p202 = scmp.le.s32.totalorder 1, %s16
      %p203 = scmp.lt.s32.totalorder %s16, 3
      %p204 = pnand %p202, %p203
      %p205 = pneg %p204
      // Predicated region
      $region9: #{mlp_policy_forward.1} parent=5 // pred_check
        _
      $region10: #{mlp_policy_forward.1} parent=5 // pred_check_branch
        %207 = sbr.rel (%p204) target = $region12
      $region11: #{mlp_policy_forward.1} parent=5 // pred_region
        %s208 = ssub.s32 %s16, 1
        // Predicated region
        $region13: #{mlp_policy_forward.1} parent=11 // pred_check
          %p209 = pneg %p63
        $region14: #{mlp_policy_forward.1} parent=11 // pred_check_branch
          %211 = sbr.rel (%p209) target = $region16
        $region15: #{mlp_policy_forward.1} parent=11 // pred_region
          _
        $region16: #{mlp_policy_forward.1} parent=11 // pred_fallthru
          _
        // Predicated region
        $region17: #{mlp_policy_forward.1} parent=11 // pred_check
          %p212 = pneg %p84
        $region18: #{mlp_policy_forward.1} parent=11 // pred_check_branch
          %214 = sbr.rel (%p212) target = $region20
        $region19: #{mlp_policy_forward.1} parent=11 // pred_region
          _
        $region20: #{mlp_policy_forward.1} parent=11 // pred_fallthru
          _
        // Predicated region
        $region21: #{mlp_policy_forward.1} parent=11 // pred_check
          %p215 = pneg %p105
        $region22: #{mlp_policy_forward.1} parent=11 // pred_check_branch
          %217 = sbr.rel (%p215) target = $region24
        $region23: #{mlp_policy_forward.1} parent=11 // pred_region
          _
        $region24: #{mlp_policy_forward.1} parent=11 // pred_fallthru
          _
        // Predicated region
        $region25: #{mlp_policy_forward.1} parent=11 // pred_check
          %p218 = pneg %p126
        $region26: #{mlp_policy_forward.1} parent=11 // pred_check_branch
          %220 = sbr.rel (%p218) target = $region28
        $region27: #{mlp_policy_forward.1} parent=11 // pred_region
          _
        $region28: #{mlp_policy_forward.1} parent=11 // pred_fallthru
          _
        // Predicated region
        $region29: #{mlp_policy_forward.1} parent=11 // pred_check
          %p221 = pneg %p147
        $region30: #{mlp_policy_forward.1} parent=11 // pred_check_branch
          %223 = sbr.rel (%p221) target = $region32
        $region31: #{mlp_policy_forward.1} parent=11 // pred_region
          _
        $region32: #{mlp_policy_forward.1} parent=11 // pred_fallthru
          _
        // Predicated region
        $region33: #{mlp_policy_forward.1} parent=11 // pred_check
          %p224 = pneg %p168
        $region34: #{mlp_policy_forward.1} parent=11 // pred_check_branch
          %226 = sbr.rel (%p224) target = $region36
        $region35: #{mlp_policy_forward.1} parent=11 // pred_region
          _
        $region36: #{mlp_policy_forward.1} parent=11 // pred_fallthru
          _
      $region12: #{mlp_policy_forward.1} parent=5 // pred_fallthru
        _
      %p227 = scmp.lt.s32.totalorder %s16, 2
      // Predicated region
      $region37: #{mlp_policy_forward.1} parent=5 // pred_check
        %p228 = pneg %p227
      $region38: #{mlp_policy_forward.1} parent=5 // pred_check_branch
        %230 = sbr.rel (%p228) target = $region40
      $region39: #{mlp_policy_forward.1} parent=5 // pred_region
        // Predicated region
        $region41: #{mlp_policy_forward.1} parent=39 // pred_check
          %p231 = pneg %p36
        $region42: #{mlp_policy_forward.1} parent=39 // pred_check_branch
          %233 = sbr.rel (%p231) target = $region44
        $region43: #{mlp_policy_forward.1} parent=39 // pred_region
          %s234 = smul.u32 3, %s16
          %p235 = scmp.lt.s32.totalorder %s234, 5
          %s236 = scalar_select %p235, %s234, 5
          %s237 = smul.addr %s236, 8
          %s238 = scalar_lea.vmem %s0, %s237
          %s239 = smul.u32 3, %s16
        $region44: #{mlp_policy_forward.1} parent=39 // pred_fallthru
          _
      $region40: #{mlp_policy_forward.1} parent=5 // pred_fallthru
        _
      %p240 = scmp.le.s32.totalorder 1, %s16
      %p241 = scmp.lt.s32.totalorder %s16, 3
      %p242 = pnand %p240, %p241
      %p243 = pneg %p242
      // Predicated region
      $region45: #{mlp_policy_forward.1} parent=5 // pred_check
        _
      $region46: #{mlp_policy_forward.1} parent=5 // pred_check_branch
        %245 = sbr.rel (%p242) target = $region48
      $region47: #{mlp_policy_forward.1} parent=5 // pred_region
        %s246 = ssub.s32 %s16, 1
        %s247 = smul.u32 3, %s21
        %p248 = scmp.lt.s32.totalorder %s247, 5
        %s249 = scalar_select %p248, %s247, 5
        %s250 = smul.addr %s249, 8
        %s251 = scalar_lea.vmem %s0, %s250
        %p252 = pneg %p42
        %p253 = pneg %p39
        %p254 = pneg %p63
        %p255 = pneg %p60
        %p256 = pneg %p84
        %p257 = pneg %p81
        %p258 = pneg %p105
        %p259 = pneg %p102
        %p260 = pneg %p126
        %p261 = pneg %p123
        %p262 = pneg %p147
        %p263 = pneg %p144
        %p264 = pneg %p168
        %p265 = pneg %p165
        %p266 = pneg %p194
        %p267 = pneg %p191
        %s268 = sand.u32 %s181, 1
        %s269 = scalar_lea.sflag [#allocation3], %s268
        %s270 = sand.u32 %s181, 1
        %s271 = smul.addr %s270, 24
        %s272 = scalar_lea.vmem [#allocation2], %s271
        %s273 = smul.u32 3, %s21
        %p274 = scmp.lt.s32.totalorder %s273, 5
        %s275 = scalar_select %p274, %s273, 5
        %s276 = smul.addr %s275, 8
        %s277 = scalar_lea.vmem %s0, %s276
        %s278 = smul.u32 3, %s21
        %s279 = smul.u32 3, %s21
        %v281 = vld [vmem:[%s277] sm:$0xff]
        %v282 = vld [vmem:[%s277 + $0x8] sm:$0xff]
        %v283 = vld [vmem:[%s277 + $0x10] sm:$0xff]
        %v284 = vpack.c.bf16 %v282, %v281
        %v285 = vpack.c.bf16 %v283, %v283
        %v286 = vld [vmem:[%s1] sm:$0xf]
        %v287 = vld [vmem:[%s1 + $0x4] sm:$0x3]
        %v288 = vld [vmem:[%s2] sm:$0x1]
        %v290 = vperm.slane %v288, 0
        %v294 = vunpack.c.l.b16 %v286
        %v295 = vunpack.c.l.b16 %v287
        %v296 = vpack.c.b16 %v295, %v294
        %vm297 = vcmask 89088
        %v299 = vsel %vm297, %v284, 0
        %v302 = vsel %vm297, %v285, 0
        %vm304 = vcmask 1044480
        %vm305 = vcmask 1045504
        %v306 = vsel %vm304, 4294967295, 65535
        %v307 = vsel %vm305, %v306, 0
        %v309 = vand.u32 %v296, %v307
        %311 = vmatpush.bf16.msra.mxu0 0
        %312 = vmatpush.bf16.msra.mxu0 0
        %313 = vmatpush.bf16.msra.mxu0 0
        %314 = vmatpush.bf16.msra.mxu0 0
        %315 = vmatpush.bf16.msra.mxu0 0
        %316 = vmatpush.bf16.msra.mxu0 0
        %317 = vmatpush.bf16.msra.mxu0 0
        %318 = vmatpush.bf16.msra.mxu0 %v309
        %319 = vmatmul.bf16.gmra.mxu0 %v299
        %v320 = vpop.f32.mrf.mxu0
        %v321 = vadd.f32 %v290, %v320
        %v322 = vpop.f32.mrf.mxu0
        %v323 = vadd.f32 %v290, %v322
        %324 = vmatmul.bf16.gmra.mxu0 %v302
        %v325 = vpop.f32.mrf.mxu0
        %v326 = vadd.f32 %v290, %v325
        %v327 = vpop.f32.mrf.mxu0
        %328 = vdwg.mxu0
        %v329 = vtanh.pop %v321
        %v330 = vtanh.pop %v323
        %v331 = vtanh.pop %v326
        %v332 = vpack.c.bf16 %v330, %v329
        %v333 = vpack.c.bf16 %v331, %v331
        %v334 = vld [vmem:[%s3] sm:$0xf]
        %v335 = vld [vmem:[%s3 + $0x4] sm:$0xf]
        %v336 = vld [vmem:[%s3 + $0x8] sm:$0xf]
        %v337 = vld [vmem:[%s3 + $0xc] sm:$0xf]
        %v338 = vld [vmem:[%s3 + $0x10] sm:$0xf]
        %v339 = vld [vmem:[%s3 + $0x14] sm:$0xf]
        %v340 = vld [vmem:[%s3 + $0x18] sm:$0xf]
        %v341 = vld [vmem:[%s3 + $0x1c] sm:$0xf]
        %v342 = vld [vmem:[%s3 + $0x20] sm:$0xf]
        %v343 = vld [vmem:[%s3 + $0x24] sm:$0xf]
        %v344 = vld [vmem:[%s3 + $0x28] sm:$0xf]
        %v345 = vld [vmem:[%s3 + $0x2c] sm:$0xf]
        %v346 = vld [vmem:[%s3 + $0x30] sm:$0xf]
        %v347 = vld [vmem:[%s3 + $0x34] sm:$0xf]
        %v348 = vld [vmem:[%s3 + $0x38] sm:$0xf]
        %v349 = vld [vmem:[%s3 + $0x3c] sm:$0xf]
        %v350 = vld [vmem:[%s4] sm:$0x1]
        %v352 = vperm.slane %v350, 0
        %v370 = vunpack.c.l.b16 %v334
        %v371 = vunpack.c.l.b16 %v335
        %v372 = vunpack.c.l.b16 %v336
        %v373 = vunpack.c.l.b16 %v337
        %v374 = vunpack.c.l.b16 %v338
        %v375 = vunpack.c.l.b16 %v339
        %v376 = vunpack.c.l.b16 %v340
        %v377 = vunpack.c.l.b16 %v341
        %v378 = vunpack.c.l.b16 %v342
        %v379 = vunpack.c.l.b16 %v343
        %v380 = vunpack.c.l.b16 %v344
        %v381 = vunpack.c.l.b16 %v345
        %v382 = vunpack.c.l.b16 %v346
        %v383 = vunpack.c.l.b16 %v347
        %v384 = vunpack.c.l.b16 %v348
        %v385 = vunpack.c.l.b16 %v349
        %v386 = vpack.c.b16 %v371, %v370
        %v387 = vpack.c.b16 %v373, %v372
        %v388 = vpack.c.b16 %v375, %v374
        %v389 = vpack.c.b16 %v377, %v376
        %v390 = vpack.c.b16 %v379, %v378
        %v391 = vpack.c.b16 %v381, %v380
        %v392 = vpack.c.b16 %v383, %v382
        %v393 = vpack.c.b16 %v385, %v384
        %402 = vmatpush.bf16.msra.mxu0 %v393
        %403 = vmatpush.bf16.msra.mxu0 %v392
        %404 = vmatpush.bf16.msra.mxu0 %v391
        %405 = vmatpush.bf16.msra.mxu0 %v390
        %406 = vmatpush.bf16.msra.mxu0 %v389
        %407 = vmatpush.bf16.msra.mxu0 %v388
        %408 = vmatpush.bf16.msra.mxu0 %v387
        %409 = vmatpush.bf16.msra.mxu0 %v386
        %410 = vmatmul.bf16.gmra.mxu0 %v332
        %v411 = vpop.f32.mrf.mxu0
        %v412 = vadd.f32 %v352, %v411
        %v413 = vpop.f32.mrf.mxu0
        %v414 = vadd.f32 %v352, %v413
        %415 = vmatmul.bf16.gmra.mxu0 %v333
        %v416 = vpop.f32.mrf.mxu0
        %v417 = vadd.f32 %v352, %v416
        %v418 = vpop.f32.mrf.mxu0
        %419 = vdwg.mxu0
        %v420 = vtanh.pop %v412
        %v421 = vtanh.pop %v414
        %v422 = vtanh.pop %v417
        %v423 = vpack.c.bf16 %v421, %v420
        %v424 = vpack.c.bf16 %v422, %v422
        %v425 = vld [vmem:[%s5] sm:$0xf]
        %v426 = vld [vmem:[%s5 + $0x4] sm:$0xf]
        %v427 = vld [vmem:[%s5 + $0x8] sm:$0xf]
        %v428 = vld [vmem:[%s5 + $0xc] sm:$0xf]
        %v429 = vld [vmem:[%s5 + $0x10] sm:$0xf]
        %v430 = vld [vmem:[%s5 + $0x14] sm:$0xf]
        %v431 = vld [vmem:[%s5 + $0x18] sm:$0xf]
        %v432 = vld [vmem:[%s5 + $0x1c] sm:$0xf]
        %v433 = vld [vmem:[%s5 + $0x20] sm:$0xf]
        %v434 = vld [vmem:[%s5 + $0x24] sm:$0xf]
        %v435 = vld [vmem:[%s5 + $0x28] sm:$0xf]
        %v436 = vld [vmem:[%s5 + $0x2c] sm:$0xf]
        %v437 = vld [vmem:[%s5 + $0x30] sm:$0xf]
        %v438 = vld [vmem:[%s5 + $0x34] sm:$0xf]
        %v439 = vld [vmem:[%s5 + $0x38] sm:$0xf]
        %v440 = vld [vmem:[%s5 + $0x3c] sm:$0xf]
        %v441 = vld [vmem:[%s6] sm:$0x1]
        %v443 = vperm.slane %v441, 0
        %v461 = vunpack.c.l.b16 %v425
        %v462 = vunpack.c.l.b16 %v426
        %v463 = vunpack.c.l.b16 %v427
        %v464 = vunpack.c.l.b16 %v428
        %v465 = vunpack.c.l.b16 %v429
        %v466 = vunpack.c.l.b16 %v430
        %v467 = vunpack.c.l.b16 %v431
        %v468 = vunpack.c.l.b16 %v432
        %v469 = vunpack.c.l.b16 %v433
        %v470 = vunpack.c.l.b16 %v434
        %v471 = vunpack.c.l.b16 %v435
        %v472 = vunpack.c.l.b16 %v436
        %v473 = vunpack.c.l.b16 %v437
        %v474 = vunpack.c.l.b16 %v438
        %v475 = vunpack.c.l.b16 %v439
        %v476 = vunpack.c.l.b16 %v440
        %v477 = vpack.c.b16 %v462, %v461
        %v478 = vpack.c.b16 %v464, %v463
        %v479 = vpack.c.b16 %v466, %v465
        %v480 = vpack.c.b16 %v468, %v467
        %v481 = vpack.c.b16 %v470, %v469
        %v482 = vpack.c.b16 %v472, %v471
        %v483 = vpack.c.b16 %v474, %v473
        %v484 = vpack.c.b16 %v476, %v475
        %493 = vmatpush.bf16.msra.mxu0 %v484
        %494 = vmatpush.bf16.msra.mxu0 %v483
        %495 = vmatpush.bf16.msra.mxu0 %v482
        %496 = vmatpush.bf16.msra.mxu0 %v481
        %497 = vmatpush.bf16.msra.mxu0 %v480
        %498 = vmatpush.bf16.msra.mxu0 %v479
        %499 = vmatpush.bf16.msra.mxu0 %v478
        %500 = vmatpush.bf16.msra.mxu0 %v477
        %501 = vmatmul.bf16.gmra.mxu0 %v423
        %v502 = vpop.f32.mrf.mxu0
        %v503 = vadd.f32 %v443, %v502
        %v504 = vpop.f32.mrf.mxu0
        %v505 = vadd.f32 %v443, %v504
        %506 = vmatmul.bf16.gmra.mxu0 %v424
        %v507 = vpop.f32.mrf.mxu0
        %v508 = vadd.f32 %v443, %v507
        %v509 = vpop.f32.mrf.mxu0
        %510 = vdwg.mxu0
        %511 = vst [vmem:[%s272] sm:$0xff] %v503
        %512 = vst [vmem:[%s272 + $0x8] sm:$0xff] %v505
        %513 = vst [vmem:[%s272 + $0x10] sm:$0xff] %v508
        %s514 = sand.u32 %s181, 1
        %s515 = scalar_lea.sflag [#allocation3], %s514
        %s516 = sand.u32 %s181, 1
        %s517 = smul.addr %s516, 24
        %s518 = scalar_lea.vmem [#allocation2], %s517
        // Predicated region
        $region49: #{mlp_policy_forward.1} parent=47 // pred_check
          %p519 = pneg %p191
        $region50: #{mlp_policy_forward.1} parent=47 // pred_check_branch
          %521 = sbr.rel (%p519) target = $region52
        $region51: #{mlp_policy_forward.1} parent=47 // pred_region
          %s522 = smul.u32 3, %s21
          %524 = vsyncadd %s515, 0
          %s525 = smul.addr %s522, 8
          %s526 = scalar_lea.hbm %s7, %s525
          %s527 = sshll.u32 %s518, 4
          %s528 = int_to_ptr.vmem [resolvable:$true] %s527
          %s529 = sshll.u32 %s526, 4
          %s530 = int_to_ptr.hbm [resolvable:$true] %s529
          %535 = dma.vmem_to_hbm [thread:$0]  %s528, 384, %s530, %s515, 128, 128, 8
        $region52: #{mlp_policy_forward.1} parent=47 // pred_fallthru
          _
      $region48: #{mlp_policy_forward.1} parent=5 // pred_fallthru
        _
      %p536 = scmp.le.s32.totalorder 2, %s16
      // Predicated region
      $region53: #{mlp_policy_forward.1} parent=5 // pred_check
        %p537 = pneg %p536
      $region54: #{mlp_policy_forward.1} parent=5 // pred_check_branch
        %539 = sbr.rel (%p537) target = $region56
      $region55: #{mlp_policy_forward.1} parent=5 // pred_region
        %s540 = ssub.s32 %s16, 2
        // Predicated region
        $region57: #{mlp_policy_forward.1} parent=55 // pred_check
          %p541 = pneg %p197
        $region58: #{mlp_policy_forward.1} parent=55 // pred_check_branch
          %543 = sbr.rel (%p541) target = $region60
        $region59: #{mlp_policy_forward.1} parent=55 // pred_region
          %s544 = sand.u32 %s182, 1
          %s545 = scalar_lea.sflag [#allocation3], %s544
          %s546 = sand.u32 %s182, 1
          %s547 = smul.addr %s546, 24
          %s548 = scalar_lea.vmem [#allocation2], %s547
          %550 = dma.done %s545, 384
        $region60: #{mlp_policy_forward.1} parent=55 // pred_fallthru
          _
      $region56: #{mlp_policy_forward.1} parent=5 // pred_fallthru
        _
    $region6: #{mlp_policy_forward.1} parent=1 // loop_footer
      %s20 = sadd.s32 1, %s16
    $region7: #{mlp_policy_forward.1} parent=1 // loop_footer_branch
      %15 = sbr.rel target = $region3
    $region8: #{mlp_policy_forward.1} parent=1 // loop_exit
      _
    %551 = vsyncpa [#allocation3], 1
    %s552 = scalar_lea.sflag [#allocation3], 1
    %553 = vsyncpa %s552, 1

</llo_original>
